<compile_context>
chip_gen: v7x
topology: tpu7x:2x2x1
jax: 0.10.0
libtpu: 0.0.40
codegen_flags: <defaults>
</compile_context>

<pallas_src>
import numpy as np
import jax
import jax.numpy as jnp
from jax.experimental import pallas as pl
from jax.experimental.pallas import tpu as pltpu


def _round_up(x: int, m: int) -> int:
    return ((x + m - 1) // m) * m


def _bow_kernel(idx_ref, sel_ref, val_ref, wt_ref, out_ref):
    """One row tile of the bag-of-words embedding.

    idx_ref: (C, TILE_N) int32 raw per-channel codes (pad columns are -1).
    sel_ref: (V, C) f32 constant; sel[r, c] = 1 iff table row r belongs to channel c.
    val_ref: (V, 1) f32 constant; val[r] = r % max_value (the code row r encodes).
    wt_ref : (D, V) f32 embedding table, pre-transposed (VMEM resident).
    out_ref: (D, TILE_N) f32 lane-dense output tile.
    """
    idx_f = idx_ref[...].astype(jnp.float32)                      # (C, TILE_N), tiny
    # Sublane-expand the C channel codes to the V table rows on the MXU
    # (negligible FLOPs; keeps this work off the VPU):
    #   expanded[r, n] = idx[r // max_value, n]
    expanded = jnp.dot(sel_ref[...], idx_f,
                       preferred_element_type=jnp.float32)        # (V, TILE_N)
    # Single compare + single convert builds the multi-hot.  Channel bands of
    # the table are disjoint, so no OR / sum over channels is needed.  This is
    # the only full (V, TILE_N) VPU work in the kernel.
    multihot = (expanded == val_ref[...]).astype(jnp.float32)     # (V, TILE_N)
    # (D, V) @ (V, TILE_N) on the MXU == per-row sum of the C embedding rows,
    # written transposed so TILE_N occupies the 128-wide lane axis (unmasked
    # full-lane stores).
    out_ref[...] = jnp.dot(wt_ref[...], multihot,
                           preferred_element_type=jnp.float32)


def _bow_embedding_xla(inputs, weight, max_value):
    """Pure-XLA path (also the correctness reference): mirrors PyTorch exactly."""
    C = inputs.shape[-1]
    offsets = jnp.arange(C, dtype=jnp.int32) * max_value
    idx = inputs.astype(jnp.int32) + offsets[None, None, None, :]
    emb = jnp.take(jnp.asarray(weight, jnp.float32), idx, axis=0)  # (B, X, Y, C, D)
    x = emb.sum(axis=3)                                            # (B, X, Y, D)
    return jnp.transpose(x, (0, 3, 1, 2))                          # (B, D, X, Y)


def minigrid_bow_embedding(inputs, weight, max_value, *, tile_n=None,
                           min_rows_for_kernel=4096):
    """inputs: (B, X, Y, C) integer-valued; weight: (C*max_value, D).

    Returns (B, D, X, Y) float32 (matches the PyTorch NCHW output).
    `tile_n` is sweepable (rounded up to a multiple of 256).
    """
    B, X, Y, C = inputs.shape
    V, D = weight.shape
    if V != C * max_value:
        raise ValueError(f"weight rows {V} != channels*max_value {C * max_value}")
    N = B * X * Y

    # Small-N fast path: real MiniGrid shapes (N = B*49) are dominated by the
    # fixed launch / pipeline cost and 256-lane padding; plain XLA wins and it
    # also sidesteps the single-tile / idle-TC situation on v7x.
    if N < min_rows_for_kernel:
        return _bow_embedding_xla(inputs, weight, max_value)

    # ---- Row tiling -------------------------------------------------------
    if tile_n is None:
        cap = 8192                              # ~1 KB VMEM per lane -> ~8 MiB/tile,
                                                # fits v5e's 16 MiB default scoped limit
        num_tiles = max(2, pl.cdiv(N, cap))     # >=2 tiles so both v7x TCs get work
        if num_tiles % 2:
            num_tiles += 1                      # even tile count -> balanced TCs
        tile_n = _round_up(pl.cdiv(N, num_tiles), 256)
    else:
        tile_n = _round_up(int(tile_n), 256)    # keep output stores lane-dense
    n_pad = _round_up(N, tile_n)
    num_tiles = n_pad // tile_n

    # ---- Lane-dense index layout: (C, N) ----------------------------------
    # Pad columns with -1: it can never equal a valid per-row code (>= 0).
    idx_cn = jnp.moveaxis(inputs.astype(jnp.int32), -1, 0).reshape(C, N)
    if n_pad != N:
        idx_cn = jnp.pad(idx_cn, ((0, 0), (0, n_pad - N)), constant_values=-1)

    # Tiny compile-time constants describing the table layout.
    rows = np.arange(V)
    sel = (rows[:, None] // max_value == np.arange(C)[None, :]).astype(np.float32)
    val = (rows % max_value).astype(np.float32)[:, None]
    sel = jnp.asarray(sel)                      # (V, C)
    val = jnp.asarray(val)                      # (V, 1)
    weight_t = jnp.asarray(weight, jnp.float32).T   # (D, V), stays VMEM resident

    # ---- VMEM budget / compiler params -------------------------------------
    v_pad = _round_up(V, 8)
    bytes_per_lane = (2 * 8 * 4        # idx tile (3 -> 8 sublanes), double-buffered
                      + 2 * D * 4      # output tile, double-buffered
                      + 3 * v_pad * 4  # expanded / mask / multihot temporaries
                      + 8 * 4)         # idx_f
    vmem_est = bytes_per_lane * tile_n + (1 << 20)   # + resident tables & slack
    ck = dict(dimension_semantics=("parallel",))     # shard row tiles over v7x's 2 TCs
    if vmem_est > 12 * 2**20:
        # Only triggers when tile_n is swept well past the default (v5e's
        # default scoped VMEM is 16 MiB; v6e/v7x default to 32 MiB).
        ck["vmem_limit_bytes"] = int(min(vmem_est * 3 // 2, 100 * 2**20))

    out_flat = pl.pallas_call(
        _bow_kernel,
        out_shape=jax.ShapeDtypeStruct((D, n_pad), jnp.float32),
        grid=(num_tiles,),
        in_specs=[
            pl.BlockSpec((C, tile_n), lambda i: (0, i)),   # index tile
            pl.BlockSpec((V, C), lambda i: (0, 0)),        # channel selector (resident)
            pl.BlockSpec((V, 1), lambda i: (0, 0)),        # per-row code value (resident)
            pl.BlockSpec((D, V), lambda i: (0, 0)),        # embedding table (resident)
        ],
        out_specs=pl.BlockSpec((D, tile_n), lambda i: (0, i)),
        compiler_params=pltpu.CompilerParams(**ck),
    )(idx_cn, sel, val, weight_t)

    # (D, N) -> (D, B, X, Y) -> (B, D, X, Y).  The permute only swaps major
    # dims (Y stays on lanes), but it is still an extra HBM read+write of the
    # output unless XLA fuses it into the consumer.
    # TODO(synk): expose a (D, B, X, Y) / channels-last return option so the
    # consumer can absorb the permute (or emit (B, D, XY) natively for huge
    # batches); kept as-is to match the module's NCHW output contract exactly.
    # TODO(synk): PositionalEncoding2D path (add_positional_enc=True) not
    # implemented; default module config uses nn.Identity(), matched here.
    out = out_flat[:, :N].reshape(D, B, X, Y)
    return jnp.transpose(out, (1, 0, 2, 3))


if __name__ == "__main__":
    # Module hyperparameters (defaults of MiniGridBOWEmbedding).
    embedding_dim = 32
    max_values = [11, 6, 3]
    max_value = max(max_values)              # 11
    n_channels = 3
    view_size = 7

    key = jax.random.PRNGKey(0)
    k_w, k_small, k_large = jax.random.split(key, 3)

    # Deterministic embedding weight init: normal(0, 1/sqrt(D)),
    # table size = len(channel_names) * max_value = 33.
    initializer_range = 1.0 / np.sqrt(embedding_dim)
    weight = (jax.random.normal(k_w, (n_channels * max_value, embedding_dim),
                                dtype=jnp.float32) * initializer_range)

    def make_inputs(k, batch):
        ks = jax.random.split(k, n_channels)
        chans = [jax.random.randint(ks[c], (batch, view_size, view_size, 1),
                                    0, max_values[c])
                 for c in range(n_channels)]
        return jnp.concatenate(chans, axis=-1).astype(jnp.float32)  # (B, X, Y, C)

    # (1) Module-sized input (batch=2, N=98): default dispatch takes the XLA
    #     fast path; additionally force the Pallas kernel path to validate it
    #     at tiny N (single padded 256-lane tile).
    x_small = make_inputs(k_small, 2)
    ref_small = _bow_embedding_xla(x_small, weight, max_value)
    out_fast = jax.block_until_ready(
        minigrid_bow_embedding(x_small, weight, max_value))
    out_kern_small = jax.block_until_ready(
        minigrid_bow_embedding(x_small, weight, max_value, min_rows_for_kernel=0))
    assert out_fast.shape == (2, embedding_dim, view_size, view_size), out_fast.shape
    assert out_kern_small.shape == (2, embedding_dim, view_size, view_size)
    np.testing.assert_allclose(np.asarray(out_fast), np.asarray(ref_small),
                               rtol=1e-5, atol=1e-5)
    np.testing.assert_allclose(np.asarray(out_kern_small), np.asarray(ref_small),
                               rtol=1e-5, atol=1e-5)

    # (2) Batched-rollout-sized input (batch=96 -> N=4704): dispatches to the
    #     Pallas kernel with a 2-tile grid (exercises row padding, the
    #     "parallel" grid axis, and VMEM-resident tables across tiles).
    x_large = make_inputs(k_large, 96)
    ref_large = _bow_embedding_xla(x_large, weight, max_value)
    out_kern_large = jax.block_until_ready(
        minigrid_bow_embedding(x_large, weight, max_value))
    assert out_kern_large.shape == (96, embedding_dim, view_size, view_size)
    np.testing.assert_allclose(np.asarray(out_kern_large), np.asarray(ref_large),
                               rtol=1e-5, atol=1e-5)

    print("KERNEL_OK")
</pallas_src>

<mosaic_0001>
module attributes {stable_mosaic.version = 11 : i64} {
  func.func @_bow_kernel(%arg0: i32, %arg1: memref<3x256xi32, #tpu.memory_space<vmem>>, %arg2: memref<33x3xf32, #tpu.memory_space<vmem>>, %arg3: memref<33x1xf32, #tpu.memory_space<vmem>>, %arg4: memref<32x33xf32, #tpu.memory_space<vmem>>, %arg5: memref<32x256xf32, #tpu.memory_space<vmem>>) attributes {dimension_semantics = [#tpu.dimension_semantics<parallel>], iteration_bounds = array<i64: 1>, scalar_prefetch = 0 : i64, scratch_operands = 0 : i64, tpu.core_type = #tpu.core_type<tc>, window_params = [{transform_indices = @transform_0, window_bounds = array<i64: 3, 256>}, {pipeline_mode = #tpu.pipeline_mode<synchronous>, transform_indices = @transform_1, window_bounds = array<i64: 33, 3>}, {pipeline_mode = #tpu.pipeline_mode<synchronous>, transform_indices = @transform_2, window_bounds = array<i64: 33, 1>}, {pipeline_mode = #tpu.pipeline_mode<synchronous>, transform_indices = @transform_3, window_bounds = array<i64: 32, 33>}, {transform_indices = @transform_4, window_bounds = array<i64: 32, 256>}]} {
    %c0 = arith.constant 0 : index
    %c0_0 = arith.constant 0 : index
    %0 = vector.load %arg1[%c0, %c0_0] : memref<3x256xi32, #tpu.memory_space<vmem>>, vector<3x256xi32>
    %1 = arith.sitofp %0 : vector<3x256xi32> to vector<3x256xf32>
    %c0_1 = arith.constant 0 : index
    %c0_2 = arith.constant 0 : index
    %2 = vector.load %arg2[%c0_1, %c0_2] : memref<33x3xf32, #tpu.memory_space<vmem>>, vector<33x3xf32>
    %cst = arith.constant dense<0.000000e+00> : vector<33x256xf32>
    %3 = tpu.matmul %2, %1, %cst {dimension_numbers = #tpu.dot_dimension_numbers<[1], [0], [0], [1], [0, 0, 1, 1], [], []>} : vector<33x3xf32>, vector<3x256xf32>, vector<33x256xf32> -> vector<33x256xf32>
    %c0_3 = arith.constant 0 : index
    %c0_4 = arith.constant 0 : index
    %4 = vector.load %arg3[%c0_3, %c0_4] : memref<33x1xf32, #tpu.memory_space<vmem>>, vector<33x1xf32>
    %5 = vector.broadcast %4 : vector<33x1xf32> to vector<33x256xf32>
    %6 = arith.cmpf oeq, %3, %5 : vector<33x256xf32>
    %7 = arith.extui %6 : vector<33x256xi1> to vector<33x256xi32>
    %8 = arith.sitofp %7 : vector<33x256xi32> to vector<33x256xf32>
    %c0_5 = arith.constant 0 : index
    %c0_6 = arith.constant 0 : index
    %9 = vector.load %arg4[%c0_5, %c0_6] : memref<32x33xf32, #tpu.memory_space<vmem>>, vector<32x33xf32>
    %cst_7 = arith.constant dense<0.000000e+00> : vector<32x256xf32>
    %10 = tpu.matmul %9, %8, %cst_7 {dimension_numbers = #tpu.dot_dimension_numbers<[1], [0], [0], [1], [0, 0, 1, 1], [], []>} : vector<32x33xf32>, vector<33x256xf32>, vector<32x256xf32> -> vector<32x256xf32>
    %c0_8 = arith.constant 0 : index
    %c0_9 = arith.constant 0 : index
    %11 = vector.load %arg5[%c0_8, %c0_9] : memref<32x256xf32, #tpu.memory_space<vmem>>, vector<32x256xf32>
    tpu.vector_store %arg5[%c0_8, %c0_9], %10 {strides = array<i32>} : memref<32x256xf32, #tpu.memory_space<vmem>>, vector<32x256xf32>,
    return
  }
  func.func @transform_0(%arg0: i32) -> (i32, i32) {
    %c0_i32 = arith.constant 0 : i32
    %c0_i32_0 = arith.constant 0 : i32
    return %c0_i32, %arg0 : i32, i32
  }
  func.func @transform_1(%arg0: i32) -> (i32, i32) {
    %c0_i32 = arith.constant 0 : i32
    %c0_i32_0 = arith.constant 0 : i32
    %c0_i32_1 = arith.constant 0 : i32
    return %c0_i32, %c0_i32_0 : i32, i32
  }
  func.func @transform_2(%arg0: i32) -> (i32, i32) {
    %c0_i32 = arith.constant 0 : i32
    %c0_i32_0 = arith.constant 0 : i32
    %c0_i32_1 = arith.constant 0 : i32
    return %c0_i32, %c0_i32_0 : i32, i32
  }
  func.func @transform_3(%arg0: i32) -> (i32, i32) {
    %c0_i32 = arith.constant 0 : i32
    %c0_i32_0 = arith.constant 0 : i32
    %c0_i32_1 = arith.constant 0 : i32
    return %c0_i32, %c0_i32_0 : i32, i32
  }
  func.func @transform_4(%arg0: i32) -> (i32, i32) {
    %c0_i32 = arith.constant 0 : i32
    %c0_i32_0 = arith.constant 0 : i32
    return %c0_i32, %arg0 : i32, i32
  }
}

</mosaic_0001>

<llo_original>
// kernel: tpu_custom_call.1
$region0: #{tpu_custom_call.1}
  #allocation0 [shape = 'u32[]', space=smem, size = 0x4, offset = 0x4, fixed_abs, tag = 'smem constant byte address 0x4 - core index']
  #allocation1 [shape = 'u32[144,128]{1,0:T(1,128)}', space=vmem, size = 0x12000, scoped, tag = 'internal scratch']
  %s0 = inlined_call_operand.vmem [shape: s32[3,256], index: 0, kind: input, shape index: {}]
  %s1 = inlined_call_operand.vmem [shape: f32[33,3], index: 1, kind: input, shape index: {}]
  %s2 = inlined_call_operand.vmem [shape: f32[33,1], index: 2, kind: input, shape index: {}]
  %s3 = inlined_call_operand.vmem [shape: f32[32,33], index: 3, kind: input, shape index: {}]
  %s4 = inlined_call_operand.hbm [shape: f32[32,256], index: 4, kind: output, shape index: {}]
  %s5 = sld [smem:[#allocation0]]
  $region26: #{tpu_custom_call.1} parent=0
    _
  %s7 = ssub.s32 1, %s5
  %s8 = scalar_select 0, %s7, %s5
  $region1: #{tpu_custom_call.1} parent=0
    #allocation2 [shape = 'u8[32768]{0}', space=vmem, size = 0x8000, scoped, tag = 'output window, operand 0, single buffered']
    #allocation3 [shape = 's32[1]{0}', space=sflag, size = 0x4, scoped, tag = 'scoped memory for tpu_custom_call.1']
    %9 = vsyncpa [#allocation3], 0
    // Predicated region
    $region2: #{tpu_custom_call.1} parent=1 // pred_check
      _
    $region3: #{tpu_custom_call.1} parent=1 // pred_check_branch
      %11 = sbr.rel (0) target = $region5
    $region4: #{tpu_custom_call.1} parent=1 // pred_region
      _
    $region5: #{tpu_custom_call.1} parent=1 // pred_fallthru
      _
    // Predicated region
    $region6: #{tpu_custom_call.1} parent=1 // pred_check
      _
    $region7: #{tpu_custom_call.1} parent=1 // pred_check_branch
      %13 = sbr.rel (0) target = $region9
    $region8: #{tpu_custom_call.1} parent=1 // pred_region
      _
    $region9: #{tpu_custom_call.1} parent=1 // pred_fallthru
      _
    // Predicated region
    $region10: #{tpu_custom_call.1} parent=1 // pred_check
      _
    $region11: #{tpu_custom_call.1} parent=1 // pred_check_branch
      %15 = sbr.rel (0) target = $region13
    $region12: #{tpu_custom_call.1} parent=1 // pred_region
      _
    $region13: #{tpu_custom_call.1} parent=1 // pred_fallthru
      _
    // Predicated region
    $region14: #{tpu_custom_call.1} parent=1 // pred_check
      _
    $region15: #{tpu_custom_call.1} parent=1 // pred_check_branch
      %17 = sbr.rel (0) target = $region17
    $region16: #{tpu_custom_call.1} parent=1 // pred_region
      _
    $region17: #{tpu_custom_call.1} parent=1 // pred_fallthru
      _
    %v18 = vld [vmem:[%s0] sm:$0x77]
    %v19 = vcvt.s32.f32 %v18
    %v20 = vld [vmem:[%s1] sm:$0xff]
    %v21 = vld [vmem:[%s1 + $0x8] sm:$0xff]
    %v22 = vld [vmem:[%s1 + $0x10] sm:$0xff]
    %v23 = vld [vmem:[%s1 + $0x18] sm:$0xff]
    %v24 = vld [vmem:[%s1 + $0x20] sm:$0x1]
    %v26 = vcombine.high %v19, %v19
    %vm27 = vcmask 23552
    %v29 = vsel %vm27, %v20, 0
    %v32 = vsel %vm27, %v21, 0
    %v35 = vsel %vm27, %v22, 0
    %v38 = vsel %vm27, %v23, 0
    %v41 = vsel %vm27, %v24, 0
    %vm43 = vcmask 1042432
    %v44 = vsel %vm43, %v19, 0
    %v46 = vsel %vm43, %v26, 0
    %48 = vmatprep.subr.mxu0 %v46
    %49 = vmatpush1.msra.mxu0 %v44
    %50 = vmatprep.subr.mxu0 0.0
    %51 = vmatpush1.msra.mxu0 0.0
    %52 = vmatprep.subr.mxu0 0.0
    %53 = vmatpush1.msra.mxu0 0.0
    %54 = vmatprep.subr.mxu0 0.0
    %55 = vmatpush1.msra.mxu0 0.0
    %56 = vmatprep.subr.mxu0 0.0
    %57 = vmatpush1.msra.mxu0 0.0
    %58 = vmatprep.subr.mxu0 0.0
    %59 = vmatpush1.msra.mxu0 0.0
    %60 = vmatprep.subr.mxu0 0.0
    %61 = vmatpush1.msra.mxu0 0.0
    %62 = vmatprep.subr.mxu0 0.0
    %63 = vmatpush1.msra.mxu0 0.0
    %64 = vmatprep.subr.mxu0 0.0
    %65 = vmatpush1.msra.mxu0 0.0
    %66 = vmatprep.subr.mxu0 0.0
    %67 = vmatpush1.msra.mxu0 0.0
    %68 = vmatprep.subr.mxu0 0.0
    %69 = vmatpush1.msra.mxu0 0.0
    %70 = vmatprep.subr.mxu0 0.0
    %71 = vmatpush1.msra.mxu0 0.0
    %72 = vmatprep.subr.mxu0 0.0
    %73 = vmatpush1.msra.mxu0 0.0
    %74 = vmatprep.subr.mxu0 0.0
    %75 = vmatpush1.msra.mxu0 0.0
    %76 = vmatprep.subr.mxu0 0.0
    %77 = vmatpush1.msra.mxu0 0.0
    %78 = vmatprep.subr.mxu0 0.0
    %79 = vmatpush1.msra.mxu0 0.0
    %80 = vmatprep.subr.mxu0 0.0
    %81 = vmatpush1.msra.mxu0 0.0
    %82 = vmatprep.subr.mxu0 0.0
    %83 = vmatpush1.msra.mxu0 0.0
    %84 = vmatprep.subr.mxu0 0.0
    %85 = vmatpush1.msra.mxu0 0.0
    %86 = vmatprep.subr.mxu0 0.0
    %87 = vmatpush1.msra.mxu0 0.0
    %88 = vmatprep.subr.mxu0 0.0
    %89 = vmatpush1.msra.mxu0 0.0
    %90 = vmatprep.subr.mxu0 0.0
    %91 = vmatpush1.msra.mxu0 0.0
    %92 = vmatprep.subr.mxu0 0.0
    %93 = vmatpush1.msra.mxu0 0.0
    %94 = vmatprep.subr.mxu0 0.0
    %95 = vmatpush1.msra.mxu0 0.0
    %96 = vmatprep.subr.mxu0 0.0
    %97 = vmatpush1.msra.mxu0 0.0
    %98 = vmatprep.subr.mxu0 0.0
    %99 = vmatpush1.msra.mxu0 0.0
    %100 = vmatprep.subr.mxu0 0.0
    %101 = vmatpush1.msra.mxu0 0.0
    %102 = vmatprep.subr.mxu0 0.0
    %103 = vmatpush1.msra.mxu0 0.0
    %104 = vmatprep.subr.mxu0 0.0
    %105 = vmatpush1.msra.mxu0 0.0
    %106 = vmatprep.subr.mxu0 0.0
    %107 = vmatpush1.msra.mxu0 0.0
    %108 = vmatprep.subr.mxu0 0.0
    %109 = vmatpush1.msra.mxu0 0.0
    %110 = vmatprep.subr.mxu0 0.0
    %111 = vmatpush1.msra.mxu0 0.0
    %112 = vmatprep.mubr.f32.mxu0 0.0
    %113 = vmatmul.mubr.f32.gmra.mrb[0].mxu0 %v29
    %v114 = vpop.f32.mrb[0].mxu0
    %v115 = vadd.f32 0.0, %v114
    %v116 = vpop.f32.mrb[0].mxu0
    %v117 = vadd.f32 0.0, %v116
    %118 = vmatprep.mubr.f32.mxu0 0.0
    %119 = vmatmul.mubr.f32.gmra.mrb[0].mxu0 %v32
    %v120 = vpop.f32.mrb[0].mxu0
    %v121 = vadd.f32 0.0, %v120
    %v122 = vpop.f32.mrb[0].mxu0
    %v123 = vadd.f32 0.0, %v122
    %124 = vmatprep.mubr.f32.mxu0 0.0
    %125 = vmatmul.mubr.f32.gmra.mrb[0].mxu0 %v35
    %v126 = vpop.f32.mrb[0].mxu0
    %v127 = vadd.f32 0.0, %v126
    %v128 = vpop.f32.mrb[0].mxu0
    %v129 = vadd.f32 0.0, %v128
    %130 = vmatprep.mubr.f32.mxu0 0.0
    %131 = vmatmul.mubr.f32.gmra.mrb[0].mxu0 %v38
    %v132 = vpop.f32.mrb[0].mxu0
    %v133 = vadd.f32 0.0, %v132
    %v134 = vpop.f32.mrb[0].mxu0
    %v135 = vadd.f32 0.0, %v134
    %136 = vmatprep.mubr.f32.mxu0 0.0
    %137 = vmatmul.mubr.f32.gmra.mrb[0].mxu0 %v41
    %v138 = vpop.f32.mrb[0].mxu0
    %v139 = vadd.f32 0.0, %v138
    %v140 = vpop.f32.mrb[0].mxu0
    %v141 = vadd.f32 0.0, %v140
    %142 = vdwg.mxu0
    %v143 = vld [vmem:[%s2] sm:$0xff]
    %v144 = vld [vmem:[%s2 + $0x8] sm:$0xff]
    %v145 = vld [vmem:[%s2 + $0x10] sm:$0xff]
    %v146 = vld [vmem:[%s2 + $0x18] sm:$0xff]
    %v147 = vld [vmem:[%s2 + $0x20] sm:$0x1]
    %149 = vset.pattern.permute.xlu0 0
    %150 = vperm.xlu0 %149, %v143
    %v151 = vpop.permute.xlu0 %150
    %154 = vset.pattern.permute.xlu0 0
    %155 = vperm.xlu0 %154, %v144
    %v156 = vpop.permute.xlu0 %155
    %159 = vset.pattern.permute.xlu0 0
    %160 = vperm.xlu0 %159, %v145
    %v161 = vpop.permute.xlu0 %160
    %164 = vset.pattern.permute.xlu0 0
    %165 = vperm.xlu0 %164, %v146
    %v166 = vpop.permute.xlu0 %165
    %169 = vset.pattern.permute.xlu0 0
    %170 = vperm.xlu0 %169, %v147
    %v171 = vpop.permute.xlu0 %170
    %vm173 = vcmp.eq.f32.partialorder %v115, %v151
    %vm174 = vcmp.eq.f32.partialorder %v117, %v151
    %vm175 = vcmp.eq.f32.partialorder %v121, %v156
    %vm176 = vcmp.eq.f32.partialorder %v123, %v156
    %vm177 = vcmp.eq.f32.partialorder %v127, %v161
    %vm178 = vcmp.eq.f32.partialorder %v129, %v161
    %vm179 = vcmp.eq.f32.partialorder %v133, %v166
    %vm180 = vcmp.eq.f32.partialorder %v135, %v166
    %vm181 = vcmp.eq.f32.partialorder %v139, %v171
    %vm182 = vcmp.eq.f32.partialorder %v141, %v171
    %v183 = vsel %vm173, 1, 0
    %v184 = vsel %vm174, 1, 0
    %v185 = vsel %vm175, 1, 0
    %v186 = vsel %vm176, 1, 0
    %v187 = vsel %vm177, 1, 0
    %v188 = vsel %vm178, 1, 0
    %v189 = vsel %vm179, 1, 0
    %v190 = vsel %vm180, 1, 0
    %v191 = vsel %vm181, 1, 0
    %v192 = vsel %vm182, 1, 0
    %v193 = vcvt.s32.f32 %v183
    %v194 = vcvt.s32.f32 %v184
    %v195 = vcvt.s32.f32 %v185
    %v196 = vcvt.s32.f32 %v186
    %v197 = vcvt.s32.f32 %v187
    %v198 = vcvt.s32.f32 %v188
    %v199 = vcvt.s32.f32 %v189
    %v200 = vcvt.s32.f32 %v190
    %v201 = vcvt.s32.f32 %v191
    %v202 = vcvt.s32.f32 %v192
    %v203 = vld [vmem:[%s3] sm:$0xff]
    %v204 = vld [vmem:[%s3 + $0x8] sm:$0xff]
    %v205 = vld [vmem:[%s3 + $0x10] sm:$0xff]
    %v206 = vld [vmem:[%s3 + $0x18] sm:$0xff]
    %vm207 = vcmask 269312
    %v209 = vsel %vm207, %v203, 0
    %v212 = vsel %vm207, %v204, 0
    %v215 = vsel %vm207, %v205, 0
    %v218 = vsel %vm207, %v206, 0
    %vm220 = vcmask 1040384
    %v222 = vsel %vm220, %v201, 0
    %v225 = vsel %vm220, %v202, 0
    %227 = vmatprep.subr.mxu0 %v194
    %228 = vmatpush1.msra.mxu0 %v193
    %229 = vmatprep.subr.mxu0 %v196
    %230 = vmatpush1.msra.mxu0 %v195
    %231 = vmatprep.subr.mxu0 %v198
    %232 = vmatpush1.msra.mxu0 %v197
    %233 = vmatprep.subr.mxu0 %v200
    %234 = vmatpush1.msra.mxu0 %v199
    %235 = vmatprep.subr.mxu0 %v225
    %236 = vmatpush1.msra.mxu0 %v222
    %237 = vmatprep.subr.mxu0 0.0
    %238 = vmatpush1.msra.mxu0 0.0
    %239 = vmatprep.subr.mxu0 0.0
    %240 = vmatpush1.msra.mxu0 0.0
    %241 = vmatprep.subr.mxu0 0.0
    %242 = vmatpush1.msra.mxu0 0.0
    %243 = vmatprep.subr.mxu0 0.0
    %244 = vmatpush1.msra.mxu0 0.0
    %245 = vmatprep.subr.mxu0 0.0
    %246 = vmatpush1.msra.mxu0 0.0
    %247 = vmatprep.subr.mxu0 0.0
    %248 = vmatpush1.msra.mxu0 0.0
    %249 = vmatprep.subr.mxu0 0.0
    %250 = vmatpush1.msra.mxu0 0.0
    %251 = vmatprep.subr.mxu0 0.0
    %252 = vmatpush1.msra.mxu0 0.0
    %253 = vmatprep.subr.mxu0 0.0
    %254 = vmatpush1.msra.mxu0 0.0
    %255 = vmatprep.subr.mxu0 0.0
    %256 = vmatpush1.msra.mxu0 0.0
    %257 = vmatprep.subr.mxu0 0.0
    %258 = vmatpush1.msra.mxu0 0.0
    %259 = vmatprep.subr.mxu0 0.0
    %260 = vmatpush1.msra.mxu0 0.0
    %261 = vmatprep.subr.mxu0 0.0
    %262 = vmatpush1.msra.mxu0 0.0
    %263 = vmatprep.subr.mxu0 0.0
    %264 = vmatpush1.msra.mxu0 0.0
    %265 = vmatprep.subr.mxu0 0.0
    %266 = vmatpush1.msra.mxu0 0.0
    %267 = vmatprep.subr.mxu0 0.0
    %268 = vmatpush1.msra.mxu0 0.0
    %269 = vmatprep.subr.mxu0 0.0
    %270 = vmatpush1.msra.mxu0 0.0
    %271 = vmatprep.subr.mxu0 0.0
    %272 = vmatpush1.msra.mxu0 0.0
    %273 = vmatprep.subr.mxu0 0.0
    %274 = vmatpush1.msra.mxu0 0.0
    %275 = vmatprep.subr.mxu0 0.0
    %276 = vmatpush1.msra.mxu0 0.0
    %277 = vmatprep.subr.mxu0 0.0
    %278 = vmatpush1.msra.mxu0 0.0
    %279 = vmatprep.subr.mxu0 0.0
    %280 = vmatpush1.msra.mxu0 0.0
    %281 = vmatprep.subr.mxu0 0.0
    %282 = vmatpush1.msra.mxu0 0.0
    %283 = vmatprep.subr.mxu0 0.0
    %284 = vmatpush1.msra.mxu0 0.0
    %285 = vmatprep.subr.mxu0 0.0
    %286 = vmatpush1.msra.mxu0 0.0
    %287 = vmatprep.subr.mxu0 0.0
    %288 = vmatpush1.msra.mxu0 0.0
    %289 = vmatprep.subr.mxu0 0.0
    %290 = vmatpush1.msra.mxu0 0.0
    %291 = vmatprep.mubr.f32.mxu0 0.0
    %292 = vmatmul.mubr.f32.gmra.mrb[0].mxu0 %v209
    %v293 = vpop.f32.mrb[0].mxu0
    %v294 = vadd.f32 0.0, %v293
    %v295 = vpop.f32.mrb[0].mxu0
    %v296 = vadd.f32 0.0, %v295
    %297 = vmatprep.mubr.f32.mxu0 0.0
    %298 = vmatmul.mubr.f32.gmra.mrb[0].mxu0 %v212
    %v299 = vpop.f32.mrb[0].mxu0
    %v300 = vadd.f32 0.0, %v299
    %v301 = vpop.f32.mrb[0].mxu0
    %v302 = vadd.f32 0.0, %v301
    %303 = vmatprep.mubr.f32.mxu0 0.0
    %304 = vmatmul.mubr.f32.gmra.mrb[0].mxu0 %v215
    %v305 = vpop.f32.mrb[0].mxu0
    %v306 = vadd.f32 0.0, %v305
    %v307 = vpop.f32.mrb[0].mxu0
    %v308 = vadd.f32 0.0, %v307
    %309 = vmatprep.mubr.f32.mxu0 0.0
    %310 = vmatmul.mubr.f32.gmra.mrb[0].mxu0 %v218
    %v311 = vpop.f32.mrb[0].mxu0
    %v312 = vadd.f32 0.0, %v311
    %v313 = vpop.f32.mrb[0].mxu0
    %v314 = vadd.f32 0.0, %v313
    %315 = vdwg.mxu0
    %316 = vst [vmem:[#allocation2] sm:$0xff] %v294
    %317 = vst [vmem:[#allocation2 + $0x8] sm:$0xff] %v296
    %318 = vst [vmem:[#allocation2 + $0x10] sm:$0xff] %v300
    %319 = vst [vmem:[#allocation2 + $0x18] sm:$0xff] %v302
    %320 = vst [vmem:[#allocation2 + $0x20] sm:$0xff] %v306
    %321 = vst [vmem:[#allocation2 + $0x28] sm:$0xff] %v308
    %322 = vst [vmem:[#allocation2 + $0x30] sm:$0xff] %v312
    %323 = vst [vmem:[#allocation2 + $0x38] sm:$0xff] %v314
    // Predicated region
    $region18: #{tpu_custom_call.1} parent=1 // pred_check
      _
    $region19: #{tpu_custom_call.1} parent=1 // pred_check_branch
      %325 = sbr.rel (0) target = $region21
    $region20: #{tpu_custom_call.1} parent=1 // pred_region
      %s327 = ssub.s32 1024, 1024
      %328 = vsyncadd [#allocation3], %s327
      %s329 = sshll.u32 [#allocation2], 4
      %s330 = int_to_ptr.vmem [resolvable:$true] %s329
      %335 = dma.vmem_to_hbm [thread:$0]  %s330, 1024, %s4, [#allocation3], 256, 256, 16
    $region21: #{tpu_custom_call.1} parent=1 // pred_fallthru
      _
    // Predicated region
    $region22: #{tpu_custom_call.1} parent=1 // pred_check
      _
    $region23: #{tpu_custom_call.1} parent=1 // pred_check_branch
      %337 = sbr.rel (0) target = $region25
    $region24: #{tpu_custom_call.1} parent=1 // pred_region
      %338 = dma.done [#allocation3], 1024
    $region25: #{tpu_custom_call.1} parent=1 // pred_fallthru
      _
    %339 = vsyncpa [#allocation3], 1

</llo_original>
